<compile_context>
chip_gen: v5e
topology: v5e:2x2
jax: 0.10.0
libtpu: 0.0.40
codegen_flags: <defaults>
</compile_context>

<pallas_src>
import jax
import jax.numpy as jnp
import numpy as np
from jax import lax
from jax.experimental import pallas as pl
from jax.experimental.pallas import tpu as pltpu


# --------------------------------------------------------------------------- #
# Kernels
# --------------------------------------------------------------------------- #
def icnn_resident_kernel(x_ref, w_ref, b_ref, out_ref):
    """All L layers in one invocation; fused weights fully resident in VMEM.

    x_ref  : (B, D)        input
    w_ref  : (L, D+H, H)   fused, pre-clamped weights [Wx_i ; clamp(Wz_i, 0)]
    b_ref  : (L, 1, H)     biases
    out_ref: (B, H)        output
    """
    x = x_ref[...].astype(jnp.float32)
    num_layers = w_ref.shape[0]
    hidden = w_ref.shape[2]
    batch = x.shape[0]

    def layer(i, z):
        zc = jnp.concatenate([x, z], axis=-1)                       # (B, D+H)
        pre = jnp.dot(zc, w_ref[i], preferred_element_type=jnp.float32) + b_ref[i]
        return jnp.maximum(pre, 0.0)                                # ReLU

    z = lax.fori_loop(0, num_layers, layer,
                      jnp.zeros((batch, hidden), jnp.float32),
                      unroll=True)
    out_ref[...] = z.astype(out_ref.dtype)


def icnn_layer_kernel(x_ref, w_ref, b_ref, out_ref, z_ref):
    """One grid step == one ICNN layer (weights streamed; for large models).

    x_ref : (B, D)       same block every step (stays resident in VMEM)
    w_ref : (D+H, H)     fused, pre-clamped layer-i weight (layer dim squeezed)
    b_ref : (1, H)       layer-i bias
    out_ref:(B, H)       final output (resident; written on last layer)
    z_ref : (B, H) VMEM  running state zl (accumulator across grid steps)
    """
    i = pl.program_id(0)

    @pl.when(i == 0)
    def _():
        z_ref[...] = jnp.zeros_like(z_ref)

    zc = jnp.concatenate([x_ref[...].astype(jnp.float32), z_ref[...]], axis=-1)
    z_new = jnp.maximum(
        jnp.dot(zc, w_ref[...], preferred_element_type=jnp.float32) + b_ref[...],
        0.0)
    z_ref[...] = z_new

    @pl.when(i == pl.num_programs(0) - 1)
    def _():
        out_ref[...] = z_new.astype(out_ref.dtype)


# --------------------------------------------------------------------------- #
# Wrapper
# --------------------------------------------------------------------------- #
def icnn_forward(x, wx, wz, b, *, streaming=None):
    """x: (B, D); wx: (L, D, H); wz: (L, H, H); b: (L, H)  ->  (B, H)"""
    B, D = x.shape
    L, H = b.shape
    assert L >= 1, "num_layers must be >= 1 (output would never be written)"
    DH = D + H

    # Clamp hoisted out of the kernel + matmul fusion: W_i = [Wx_i ; clamp(Wz_i,0)].
    w = jnp.concatenate([wx, jnp.maximum(wz, 0.0)], axis=1)   # (L, D+H, H)
    b3 = b.reshape(L, 1, H)                                   # (L, 1, H)

    cost = pl.CostEstimate(
        flops=2 * L * B * DH * H,
        transcendentals=0,
        bytes_accessed=4 * (B * D + L * DH * H + L * H + B * H),
    )

    if streaming is None:
        # Keep all layers resident while the fused weight stack is small.
        streaming = (L * DH * H * 4) > (8 * 1024 * 1024)

    if not streaming:
        # Single invocation, no grid: everything lives in VMEM, layers unrolled.
        return pl.pallas_call(
            icnn_resident_kernel,
            out_shape=jax.ShapeDtypeStruct((B, H), x.dtype),
            cost_estimate=cost,
        )(x, w, b3)

    # Streaming path: one grid step per layer, fused weight DMA'd per step.
    # TODO(synk): for very large H on v7x (64 MiB VMEM), add an N-tile grid axis
    # (tile H into 512-1024 column blocks) and set vmem_limit_bytes explicitly.
    return pl.pallas_call(
        icnn_layer_kernel,
        out_shape=jax.ShapeDtypeStruct((B, H), x.dtype),
        grid_spec=pltpu.PrefetchScalarGridSpec(
            num_scalar_prefetch=0,
            grid=(L,),
            in_specs=[
                pl.BlockSpec((B, D), lambda i: (0, 0)),                     # x (resident)
                pl.BlockSpec((pl.Squeezed(), DH, H), lambda i: (i, 0, 0)),  # W_i fused
                pl.BlockSpec((pl.Squeezed(), 1, H), lambda i: (i, 0, 0)),   # b_i
            ],
            out_specs=pl.BlockSpec((B, H), lambda i: (0, 0)),               # resident out
            scratch_shapes=[pltpu.VMEM((B, H), jnp.float32)],               # zl state
        ),
        compiler_params=pltpu.CompilerParams(
            dimension_semantics=("arbitrary",),  # layers are a sequential recurrence
        ),
        cost_estimate=cost,
    )(x, w, b3)


# --------------------------------------------------------------------------- #
# Params / reference
# --------------------------------------------------------------------------- #
def xavier_uniform(key, fan_in, fan_out, shape):
    limit = float(np.sqrt(6.0 / (fan_in + fan_out)))
    return jax.random.uniform(key, shape, jnp.float32, -limit, limit)


def make_params(key, input_dim, hidden_dim, num_layers):
    """Deterministic init matching the module: xavier_uniform weights, zero bias.

    PyTorch Linear weight is (out, in); we store the transpose (in, out) so the
    kernel does x @ W directly.
    """
    keys = jax.random.split(key, 2 * num_layers)
    wx = jnp.stack([
        xavier_uniform(keys[2 * i], input_dim, hidden_dim, (input_dim, hidden_dim))
        for i in range(num_layers)
    ])                                                      # (L, D, H)
    wz = jnp.stack([
        xavier_uniform(keys[2 * i + 1], hidden_dim, hidden_dim, (hidden_dim, hidden_dim))
        for i in range(num_layers)
    ])                                                      # (L, H, H)
    b = jnp.zeros((num_layers, hidden_dim), jnp.float32)    # (L, H)
    return wx, wz, b


def icnn_reference(x, wx, wz, b):
    """Plain-JAX reference mirroring the PyTorch forward (un-fused)."""
    zl = jnp.zeros((x.shape[0], wx.shape[2]), jnp.float32)
    for i in range(wx.shape[0]):
        zl = jax.nn.relu(zl @ jnp.maximum(wz[i], 0.0) + x @ wx[i] + b[i][None, :])
    return zl


# --------------------------------------------------------------------------- #
# Test
# --------------------------------------------------------------------------- #
if __name__ == "__main__":
    B, input_dim, hidden_dim, num_layers = 8, 16, 32, 3

    key = jax.random.PRNGKey(0)
    kx, kp = jax.random.split(key)
    x = jax.random.normal(kx, (B, input_dim), jnp.float32)
    wx, wz, b = make_params(kp, input_dim, hidden_dim, num_layers)

    ref = icnn_reference(x, wx, wz, b)

    # Resident (collapsed-grid) path — the one chosen automatically at these sizes.
    out_resident = jax.block_until_ready(icnn_forward(x, wx, wz, b))
    np.testing.assert_allclose(np.asarray(out_resident), np.asarray(ref),
                               rtol=1e-5, atol=1e-5)

    # Streaming (layer-grid) path — exercised explicitly to validate the large-model form.
    out_streaming = jax.block_until_ready(icnn_forward(x, wx, wz, b, streaming=True))
    np.testing.assert_allclose(np.asarray(out_streaming), np.asarray(ref),
                               rtol=1e-5, atol=1e-5)

    print("KERNEL_OK")
</pallas_src>

<mosaic_0001>
module attributes {stable_mosaic.version = 11 : i64} {
  func.func @icnn_resident_kernel(%arg0: memref<8x16xf32, #tpu.memory_space<vmem>>, %arg1: memref<3x48x32xf32, #tpu.memory_space<vmem>>, %arg2: memref<3x1x32xf32, #tpu.memory_space<vmem>>, %arg3: memref<8x32xf32, #tpu.memory_space<vmem>>) attributes {dimension_semantics = [], scalar_prefetch = 0 : i64, scratch_operands = 0 : i64, tpu.core_type = #tpu.core_type<tc>} {
    %c0 = arith.constant 0 : index
    %c0_0 = arith.constant 0 : index
    %0 = vector.load %arg0[%c0, %c0_0] : memref<8x16xf32, #tpu.memory_space<vmem>>, vector<8x16xf32>
    %cst = arith.constant 0.000000e+00 : f32
    %1 = vector.broadcast %cst : f32 to vector<8x32xf32>
    %c0_i32 = arith.constant 0 : i32
    %2 = tpu.concatenate %0, %1 in 1 : vector<8x16xf32>, vector<8x32xf32> -> vector<8x48xf32>
    %3 = arith.index_cast %c0_i32 : i32 to index
    %c0_1 = arith.constant 0 : index
    %c0_2 = arith.constant 0 : index
    %4 = vector.load %arg1[%3, %c0_1, %c0_2] : memref<3x48x32xf32, #tpu.memory_space<vmem>>, vector<1x48x32xf32>
    %5 = vector.shape_cast %4 : vector<1x48x32xf32> to vector<48x32xf32>
    %cst_3 = arith.constant dense<0.000000e+00> : vector<8x32xf32>
    %6 = tpu.matmul %2, %5, %cst_3 {dimension_numbers = #tpu.dot_dimension_numbers<[1], [0], [0], [1], [0, 0, 1, 1], [], []>} : vector<8x48xf32>, vector<48x32xf32>, vector<8x32xf32> -> vector<8x32xf32>
    %7 = arith.index_cast %c0_i32 : i32 to index
    %c0_4 = arith.constant 0 : index
    %c0_5 = arith.constant 0 : index
    %8 = vector.load %arg2[%7, %c0_4, %c0_5] : memref<3x1x32xf32, #tpu.memory_space<vmem>>, vector<1x1x32xf32>
    %9 = vector.shape_cast %8 : vector<1x1x32xf32> to vector<1x32xf32>
    %10 = vector.broadcast %9 : vector<1x32xf32> to vector<8x32xf32>
    %11 = arith.addf %6, %10 : vector<8x32xf32>
    %cst_6 = arith.constant 0.000000e+00 : f32
    %12 = vector.broadcast %cst_6 : f32 to vector<8x32xf32>
    %13 = arith.maximumf %11, %12 : vector<8x32xf32>
    %c1_i32 = arith.constant 1 : i32
    %14 = tpu.concatenate %0, %13 in 1 : vector<8x16xf32>, vector<8x32xf32> -> vector<8x48xf32>
    %15 = arith.index_cast %c1_i32 : i32 to index
    %c0_7 = arith.constant 0 : index
    %c0_8 = arith.constant 0 : index
    %16 = vector.load %arg1[%15, %c0_7, %c0_8] : memref<3x48x32xf32, #tpu.memory_space<vmem>>, vector<1x48x32xf32>
    %17 = vector.shape_cast %16 : vector<1x48x32xf32> to vector<48x32xf32>
    %cst_9 = arith.constant dense<0.000000e+00> : vector<8x32xf32>
    %18 = tpu.matmul %14, %17, %cst_9 {dimension_numbers = #tpu.dot_dimension_numbers<[1], [0], [0], [1], [0, 0, 1, 1], [], []>} : vector<8x48xf32>, vector<48x32xf32>, vector<8x32xf32> -> vector<8x32xf32>
    %19 = arith.index_cast %c1_i32 : i32 to index
    %c0_10 = arith.constant 0 : index
    %c0_11 = arith.constant 0 : index
    %20 = vector.load %arg2[%19, %c0_10, %c0_11] : memref<3x1x32xf32, #tpu.memory_space<vmem>>, vector<1x1x32xf32>
    %21 = vector.shape_cast %20 : vector<1x1x32xf32> to vector<1x32xf32>
    %22 = vector.broadcast %21 : vector<1x32xf32> to vector<8x32xf32>
    %23 = arith.addf %18, %22 : vector<8x32xf32>
    %cst_12 = arith.constant 0.000000e+00 : f32
    %24 = vector.broadcast %cst_12 : f32 to vector<8x32xf32>
    %25 = arith.maximumf %23, %24 : vector<8x32xf32>
    %c2_i32 = arith.constant 2 : i32
    %26 = tpu.concatenate %0, %25 in 1 : vector<8x16xf32>, vector<8x32xf32> -> vector<8x48xf32>
    %27 = arith.index_cast %c2_i32 : i32 to index
    %c0_13 = arith.constant 0 : index
    %c0_14 = arith.constant 0 : index
    %28 = vector.load %arg1[%27, %c0_13, %c0_14] : memref<3x48x32xf32, #tpu.memory_space<vmem>>, vector<1x48x32xf32>
    %29 = vector.shape_cast %28 : vector<1x48x32xf32> to vector<48x32xf32>
    %cst_15 = arith.constant dense<0.000000e+00> : vector<8x32xf32>
    %30 = tpu.matmul %26, %29, %cst_15 {dimension_numbers = #tpu.dot_dimension_numbers<[1], [0], [0], [1], [0, 0, 1, 1], [], []>} : vector<8x48xf32>, vector<48x32xf32>, vector<8x32xf32> -> vector<8x32xf32>
    %31 = arith.index_cast %c2_i32 : i32 to index
    %c0_16 = arith.constant 0 : index
    %c0_17 = arith.constant 0 : index
    %32 = vector.load %arg2[%31, %c0_16, %c0_17] : memref<3x1x32xf32, #tpu.memory_space<vmem>>, vector<1x1x32xf32>
    %33 = vector.shape_cast %32 : vector<1x1x32xf32> to vector<1x32xf32>
    %34 = vector.broadcast %33 : vector<1x32xf32> to vector<8x32xf32>
    %35 = arith.addf %30, %34 : vector<8x32xf32>
    %cst_18 = arith.constant 0.000000e+00 : f32
    %36 = vector.broadcast %cst_18 : f32 to vector<8x32xf32>
    %37 = arith.maximumf %35, %36 : vector<8x32xf32>
    %c3_i32 = arith.constant 3 : i32
    %c0_19 = arith.constant 0 : index
    %c0_20 = arith.constant 0 : index
    %38 = vector.load %arg3[%c0_19, %c0_20] : memref<8x32xf32, #tpu.memory_space<vmem>>, vector<8x32xf32>
    tpu.vector_store %arg3[%c0_19, %c0_20], %37 {strides = array<i32>} : memref<8x32xf32, #tpu.memory_space<vmem>>, vector<8x32xf32>,
    return
  }
}

</mosaic_0001>

<llo_original>
// kernel: tpu_custom_call.1
$region0: #{tpu_custom_call.1}
  #allocation0 [shape = 'u32[]', space=smem, size = 0x4, offset = 0x4, fixed_abs, tag = 'smem constant byte address 0x4 - core index']
  #allocation1 [shape = 'u32[72,128]{1,0:T(1,128)}', space=vmem, size = 0x9000, scoped, tag = 'internal scratch']
  %s0 = inlined_call_operand.vmem [shape: f32[8,16], index: 0, kind: input, shape index: {}]
  %s1 = inlined_call_operand.vmem [shape: f32[3,48,32], index: 1, kind: input, shape index: {}]
  %s2 = inlined_call_operand.vmem [shape: f32[3,1,32], index: 2, kind: input, shape index: {}]
  %s3 = inlined_call_operand.hbm [shape: f32[8,32], index: 3, kind: output, shape index: {}]
  %s4 = sld [smem:[#allocation0]]
  $region22: #{tpu_custom_call.1} parent=0
    _
  %s6 = ssub.s32 1, %s4
  %s7 = scalar_select 0, %s6, %s4
  $region1: #{tpu_custom_call.1} parent=0
    #allocation2 [shape = 'u8[4096]{0}', space=vmem, size = 0x1000, scoped, tag = 'output window, operand 0, single buffered']
    #allocation3 [shape = 's32[1]{0}', space=sflag, size = 0x4, scoped, tag = 'scoped memory for tpu_custom_call.1']
    %8 = vsyncpa [#allocation3], 0
    // Predicated region
    $region2: #{tpu_custom_call.1} parent=1 // pred_check
      _
    $region3: #{tpu_custom_call.1} parent=1 // pred_check_branch
      %10 = sbr.rel (0) target = $region5
    $region4: #{tpu_custom_call.1} parent=1 // pred_region
      _
    $region5: #{tpu_custom_call.1} parent=1 // pred_fallthru
      _
    // Predicated region
    $region6: #{tpu_custom_call.1} parent=1 // pred_check
      _
    $region7: #{tpu_custom_call.1} parent=1 // pred_check_branch
      %12 = sbr.rel (0) target = $region9
    $region8: #{tpu_custom_call.1} parent=1 // pred_region
      _
    $region9: #{tpu_custom_call.1} parent=1 // pred_fallthru
      _
    // Predicated region
    $region10: #{tpu_custom_call.1} parent=1 // pred_check
      _
    $region11: #{tpu_custom_call.1} parent=1 // pred_check_branch
      %14 = sbr.rel (0) target = $region13
    $region12: #{tpu_custom_call.1} parent=1 // pred_region
      _
    $region13: #{tpu_custom_call.1} parent=1 // pred_fallthru
      _
    %v15 = vld [vmem:[%s0] sm:$0xff]
    %vm16 = vcmask 130048
    %v17 = vsel %vm16, %v15, 0.0
    %v18 = vld [vmem:[%s1] sm:$0xff]
    %v19 = vld [vmem:[%s1 + $0x8] sm:$0xff]
    %v20 = vld [vmem:[%s1 + $0x10] sm:$0xff]
    %v21 = vld [vmem:[%s1 + $0x18] sm:$0xff]
    %v22 = vld [vmem:[%s1 + $0x20] sm:$0xff]
    %v23 = vld [vmem:[%s1 + $0x28] sm:$0xff]
    %v24 = vld [vmem:[%s2] sm:$0x1]
    %v26 = vperm.slane %v24, 0
    %vm28 = vcmask 392192
    %v30 = vsel %vm28, %v17, 0
    %32 = vmatpush.msra.mxu0 0.0
    %33 = vmatpush.msra.mxu0 0.0
    %34 = vmatpush.msra.mxu0 0.0
    %35 = vmatpush.msra.mxu0 0.0
    %36 = vmatpush.msra.mxu0 0.0
    %37 = vmatpush.msra.mxu0 0.0
    %38 = vmatpush.msra.mxu0 0.0
    %39 = vmatpush.msra.mxu0 0.0
    %40 = vmatpush.msra.mxu0 0.0
    %41 = vmatpush.msra.mxu0 0.0
    %42 = vmatpush.msra.mxu0 %v23
    %43 = vmatpush.msra.mxu0 %v22
    %44 = vmatpush.msra.mxu0 %v21
    %45 = vmatpush.msra.mxu0 %v20
    %46 = vmatpush.msra.mxu0 %v19
    %47 = vmatpush.msra.mxu0 %v18
    %48 = vmatmul.f32.gmra.mxu0 %v30
    %v49 = vpop.f32.mrf.mxu0
    %v50 = vadd.f32 %v26, %v49
    %51 = vdwg.mxu0
    %v52 = vmax.f32 %v50, 0.0
    %54 = vrot.lane.b32.xlu0 %v52, 16
    %v55 = vpop.permute.xlu0 %54
    %v57 = vsel %vm16, %v15, %v55
    %s58 = scalar_lea.vmem %s1, 48
    %v59 = vld [vmem:[%s58] sm:$0xff]
    %v60 = vld [vmem:[%s58 + $0x8] sm:$0xff]
    %v61 = vld [vmem:[%s58 + $0x10] sm:$0xff]
    %v62 = vld [vmem:[%s58 + $0x18] sm:$0xff]
    %v63 = vld [vmem:[%s58 + $0x20] sm:$0xff]
    %v64 = vld [vmem:[%s58 + $0x28] sm:$0xff]
    %s65 = scalar_lea.vmem %s2, 1
    %v66 = vld [vmem:[%s65] sm:$0x1]
    %v68 = vperm.slane %v66, 0
    %v71 = vsel %vm28, %v57, 0
    %73 = vmatpush.msra.mxu0 0.0
    %74 = vmatpush.msra.mxu0 0.0
    %75 = vmatpush.msra.mxu0 0.0
    %76 = vmatpush.msra.mxu0 0.0
    %77 = vmatpush.msra.mxu0 0.0
    %78 = vmatpush.msra.mxu0 0.0
    %79 = vmatpush.msra.mxu0 0.0
    %80 = vmatpush.msra.mxu0 0.0
    %81 = vmatpush.msra.mxu0 0.0
    %82 = vmatpush.msra.mxu0 0.0
    %83 = vmatpush.msra.mxu0 %v64
    %84 = vmatpush.msra.mxu0 %v63
    %85 = vmatpush.msra.mxu0 %v62
    %86 = vmatpush.msra.mxu0 %v61
    %87 = vmatpush.msra.mxu0 %v60
    %88 = vmatpush.msra.mxu0 %v59
    %89 = vmatmul.f32.gmra.mxu0 %v71
    %v90 = vpop.f32.mrf.mxu0
    %v91 = vadd.f32 %v68, %v90
    %92 = vdwg.mxu0
    %v93 = vmax.f32 %v91, 0.0
    %95 = vrot.lane.b32.xlu0 %v93, 16
    %v96 = vpop.permute.xlu0 %95
    %v98 = vsel %vm16, %v15, %v96
    %s99 = scalar_lea.vmem %s1, 96
    %v100 = vld [vmem:[%s99] sm:$0xff]
    %v101 = vld [vmem:[%s99 + $0x8] sm:$0xff]
    %v102 = vld [vmem:[%s99 + $0x10] sm:$0xff]
    %v103 = vld [vmem:[%s99 + $0x18] sm:$0xff]
    %v104 = vld [vmem:[%s99 + $0x20] sm:$0xff]
    %v105 = vld [vmem:[%s99 + $0x28] sm:$0xff]
    %s106 = scalar_lea.vmem %s2, 2
    %v107 = vld [vmem:[%s106] sm:$0x1]
    %v109 = vperm.slane %v107, 0
    %v112 = vsel %vm28, %v98, 0
    %114 = vmatpush.msra.mxu0 0.0
    %115 = vmatpush.msra.mxu0 0.0
    %116 = vmatpush.msra.mxu0 0.0
    %117 = vmatpush.msra.mxu0 0.0
    %118 = vmatpush.msra.mxu0 0.0
    %119 = vmatpush.msra.mxu0 0.0
    %120 = vmatpush.msra.mxu0 0.0
    %121 = vmatpush.msra.mxu0 0.0
    %122 = vmatpush.msra.mxu0 0.0
    %123 = vmatpush.msra.mxu0 0.0
    %124 = vmatpush.msra.mxu0 %v105
    %125 = vmatpush.msra.mxu0 %v104
    %126 = vmatpush.msra.mxu0 %v103
    %127 = vmatpush.msra.mxu0 %v102
    %128 = vmatpush.msra.mxu0 %v101
    %129 = vmatpush.msra.mxu0 %v100
    %130 = vmatmul.f32.gmra.mxu0 %v112
    %v131 = vpop.f32.mrf.mxu0
    %v132 = vadd.f32 %v109, %v131
    %133 = vdwg.mxu0
    %v134 = vmax.f32 %v132, 0.0
    %vm135 = vcmask 261120
    %136 = vst.msk [vmem:[#allocation2] sm:$0xff] %vm135, %v134
    // Predicated region
    $region14: #{tpu_custom_call.1} parent=1 // pred_check
      _
    $region15: #{tpu_custom_call.1} parent=1 // pred_check_branch
      %138 = sbr.rel (0) target = $region17
    $region16: #{tpu_custom_call.1} parent=1 // pred_region
      %140 = vsyncadd [#allocation3], 0
      %s142 = sshll.u32 [#allocation2], 4
      %s143 = int_to_ptr.vmem [resolvable:$true] %s142
      %s144 = sshll.u32 %s3, 4
      %s145 = int_to_ptr.hbm [resolvable:$true] %s144
      %147 = dma.vmem_to_hbm [thread:$0]  %s143, 128, %s145, [#allocation3]
    $region17: #{tpu_custom_call.1} parent=1 // pred_fallthru
      _
    // Predicated region
    $region18: #{tpu_custom_call.1} parent=1 // pred_check
      _
    $region19: #{tpu_custom_call.1} parent=1 // pred_check_branch
      %149 = sbr.rel (0) target = $region21
    $region20: #{tpu_custom_call.1} parent=1 // pred_region
      %151 = dma.done [#allocation3], 128
    $region21: #{tpu_custom_call.1} parent=1 // pred_fallthru
      _
    %152 = vsyncpa [#allocation3], 1

</llo_original>
